<compile_context>
chip_gen: v7x
topology: tpu7x:2x2x1
jax: 0.10.0
libtpu: 0.0.40
codegen_flags: <defaults>
</compile_context>

<pallas_src>
import math
import functools

import jax
import jax.numpy as jnp
from jax.experimental import pallas as pl
from jax.experimental.pallas import tpu as pltpu


def _round_up(x, m):
    return (x + m - 1) // m * m


def _mlp_kernel(xc_ref, w_in_ref, w1_ref, w_oc_ref, wc2_ref, wc3_ref, out_ref,
                *, H, D_out):
    f32 = jnp.float32
    bf16 = jnp.bfloat16

    # dot 1: [x | cond] @ blkdiag(w0, wc1c) -> [h_pre | cond_contrib]
    hc = jnp.dot(xc_ref[...], w_in_ref[...], preferred_element_type=f32)
    h = jnp.maximum(hc[:, :H], 0.0)          # backbone ReLU #1 (f32 on VPU)
    cond_contrib = hc[:, H:]                 # cond @ wc1c (f32)

    # dot 2: backbone second Linear + ReLU
    h = jnp.maximum(
        jnp.dot(h.astype(bf16), w1_ref[...], preferred_element_type=f32), 0.0)

    # dot 3: h @ [wout | wc1h] -> [uncond | c1_h]
    oc = jnp.dot(h.astype(bf16), w_oc_ref[...], preferred_element_type=f32)
    uncond = oc[:, :D_out]
    c = oc[:, D_out:] + cond_contrib         # NO ReLU after first cond Linear

    # dot 4 / 5: conditional tail (Linear + ReLU, then final Linear)
    c = jnp.maximum(
        jnp.dot(c.astype(bf16), wc2_ref[...], preferred_element_type=f32), 0.0)
    cond_out = jnp.dot(c.astype(bf16), wc3_ref[...], preferred_element_type=f32)

    # single packed output block (one writeback stream per tile)
    out_ref[:, :D_out] = uncond.astype(out_ref.dtype)
    out_ref[:, D_out:] = cond_out.astype(out_ref.dtype)


def mlp_forward(x, cond, params, *, tile_m=1024):
    """x: (N, D_in) f32, cond: (N, D_cond) f32. Returns (uncond, cond_out) f32."""
    w0, w1, wout, wc1h, wc1c, wc2, wc3 = params
    N, D_in = x.shape
    D_cond = cond.shape[1]
    H = w0.shape[1]
    D_out = wout.shape[1]
    H2 = wc2.shape[1]
    D_cout = wc3.shape[1]
    D_comb = D_out + D_cout
    bf16 = jnp.bfloat16

    # ---- pack weights (MXU operands -> bf16) ----
    # blkdiag(w0, wc1c): (D_in + D_cond, 2H); zero blocks contribute exact 0.
    w_in = jnp.zeros((D_in + D_cond, 2 * H), jnp.float32)
    w_in = w_in.at[:D_in, :H].set(w0)
    w_in = w_in.at[D_in:, H:].set(wc1c)
    w_oc = jnp.concatenate([wout, wc1h], axis=1)          # (H, D_out + H)

    w_in_b = w_in.astype(bf16)
    w1_b = w1.astype(bf16)
    w_oc_b = w_oc.astype(bf16)
    wc2_b = wc2.astype(bf16)
    wc3_b = wc3.astype(bf16)

    # ---- pack inputs, pad ragged batch ----
    xc = jnp.concatenate([x, cond], axis=-1).astype(bf16)  # (N, D_in + D_cond)
    tile_m = max(8, min(tile_m, _round_up(N, 8)))
    N_pad = _round_up(N, tile_m)
    if N_pad != N:
        xc = jnp.pad(xc, ((0, N_pad - N), (0, 0)))
    grid = (N_pad // tile_m,)

    kernel = functools.partial(_mlp_kernel, H=H, D_out=D_out)

    def row_map(i):
        return (i, 0)

    def full_map(i):
        return (0, 0)

    out = pl.pallas_call(
        kernel,
        out_shape=jax.ShapeDtypeStruct((N_pad, D_comb), jnp.float32),
        grid_spec=pltpu.PrefetchScalarGridSpec(
            num_scalar_prefetch=0,
            grid=grid,
            in_specs=[
                pl.BlockSpec((tile_m, D_in + D_cond), row_map),   # [x | cond]
                pl.BlockSpec((D_in + D_cond, 2 * H), full_map),   # blkdiag(w0, wc1c)
                pl.BlockSpec((H, H), full_map),                   # w1
                pl.BlockSpec((H, D_out + H), full_map),           # [wout | wc1h]
                pl.BlockSpec((H, H2), full_map),                  # wc2
                pl.BlockSpec((H2, D_cout), full_map),             # wc3
            ],
            out_specs=pl.BlockSpec((tile_m, D_comb), row_map),
        ),
        compiler_params=pltpu.CompilerParams(
            dimension_semantics=("parallel",)),
    )(xc, w_in_b, w1_b, w_oc_b, wc2_b, wc3_b)

    out = out[:N]
    return out[:, :D_out], out[:, D_out:]


def _kaiming_uniform(key, fan_in, fan_out):
    # torch.nn.init.kaiming_uniform_(nonlinearity='relu'):
    # gain = sqrt(2), bound = gain * sqrt(3 / fan_in) = sqrt(6 / fan_in)
    bound = math.sqrt(6.0 / fan_in)
    # stored as (in, out) so kernel does x @ W
    return jax.random.uniform(key, (fan_in, fan_out), jnp.float32,
                              minval=-bound, maxval=bound)


def _reference_bf16(x, cond, params):
    """Mirrors the kernel's numerics: bf16 MXU operands, f32 accumulation."""
    bf = lambda a: a.astype(jnp.bfloat16)
    f32 = jnp.float32
    w0, w1, wout, wc1h, wc1c, wc2, wc3 = params
    h = jnp.maximum(jnp.dot(bf(x), bf(w0), preferred_element_type=f32), 0.0)
    cond_contrib = jnp.dot(bf(cond), bf(wc1c), preferred_element_type=f32)
    h = jnp.maximum(jnp.dot(bf(h), bf(w1), preferred_element_type=f32), 0.0)
    uncond = jnp.dot(bf(h), bf(wout), preferred_element_type=f32)
    c = jnp.dot(bf(h), bf(wc1h), preferred_element_type=f32) + cond_contrib
    c = jnp.maximum(jnp.dot(bf(c), bf(wc2), preferred_element_type=f32), 0.0)
    return uncond, jnp.dot(bf(c), bf(wc3), preferred_element_type=f32)


def _reference_f32(x, cond, params):
    w0, w1, wout, wc1h, wc1c, wc2, wc3 = params
    h = jnp.maximum(x @ w0, 0.0)
    h = jnp.maximum(h @ w1, 0.0)
    uncond = h @ wout
    c = h @ wc1h + cond @ wc1c          # no ReLU after first cond Linear
    c = jnp.maximum(c @ wc2, 0.0)
    return uncond, c @ wc3


if __name__ == "__main__":
    cfg = dict(n_input_dims=16, n_neurons=32, n_hidden_layers=2,
               n_output_dims=8, n_cond_input_dims=8, n_cond_output_dims=4)
    N = 128

    key = jax.random.PRNGKey(0)
    keys = jax.random.split(key, 8)

    H = cfg['n_neurons']
    H2 = max(1, H // 2)

    # deterministic kaiming-uniform weights (bias=False everywhere, as in module)
    w0 = _kaiming_uniform(keys[0], cfg['n_input_dims'], H)
    w1 = _kaiming_uniform(keys[1], H, H)
    wout = _kaiming_uniform(keys[2], H, cfg['n_output_dims'])
    wc1 = _kaiming_uniform(keys[3], H + cfg['n_cond_input_dims'], H)
    wc1h, wc1c = wc1[:H], wc1[H:]
    wc2 = _kaiming_uniform(keys[4], H, H2)
    wc3 = _kaiming_uniform(keys[5], H2, cfg['n_cond_output_dims'])
    params = (w0, w1, wout, wc1h, wc1c, wc2, wc3)

    x = jax.random.normal(keys[6], (N, cfg['n_input_dims']), jnp.float32)
    cond = jax.random.normal(keys[7], (N, cfg['n_cond_input_dims']), jnp.float32)

    uncond, cond_out = mlp_forward(x, cond, params)
    jax.block_until_ready((uncond, cond_out))

    # exact-numerics check against a bf16-operand / f32-accumulate reference
    ref_u, ref_c = _reference_bf16(x, cond, params)
    assert jnp.allclose(uncond, ref_u, atol=1e-3, rtol=1e-3)
    assert jnp.allclose(cond_out, ref_c, atol=1e-3, rtol=1e-3)

    # loose semantics sanity check against the pure-f32 module math
    f32_u, f32_c = _reference_f32(x, cond, params)
    assert jnp.allclose(uncond, f32_u, atol=0.2, rtol=0.1)
    assert jnp.allclose(cond_out, f32_c, atol=0.2, rtol=0.1)

    # TODO(synk): loss_scale backward hooks are training-only (grad scaling); no
    # forward-pass equivalent needed.
    print("KERNEL_OK")
</pallas_src>

<mosaic_0001>
module attributes {stable_mosaic.version = 11 : i64} {
  func.func @_mlp_kernel(%arg0: i32, %arg1: memref<128x24xbf16, #tpu.memory_space<vmem>>, %arg2: memref<24x64xbf16, #tpu.memory_space<vmem>>, %arg3: memref<32x32xbf16, #tpu.memory_space<vmem>>, %arg4: memref<32x40xbf16, #tpu.memory_space<vmem>>, %arg5: memref<32x16xbf16, #tpu.memory_space<vmem>>, %arg6: memref<16x4xbf16, #tpu.memory_space<vmem>>, %arg7: memref<128x12xf32, #tpu.memory_space<vmem>>) attributes {dimension_semantics = [#tpu.dimension_semantics<parallel>], iteration_bounds = array<i64: 1>, scalar_prefetch = 0 : i64, scratch_operands = 0 : i64, tpu.core_type = #tpu.core_type<tc>, window_params = [{transform_indices = @transform_0, window_bounds = array<i64: 128, 24>}, {pipeline_mode = #tpu.pipeline_mode<synchronous>, transform_indices = @transform_1, window_bounds = array<i64: 24, 64>}, {pipeline_mode = #tpu.pipeline_mode<synchronous>, transform_indices = @transform_2, window_bounds = array<i64: 32, 32>}, {pipeline_mode = #tpu.pipeline_mode<synchronous>, transform_indices = @transform_3, window_bounds = array<i64: 32, 40>}, {pipeline_mode = #tpu.pipeline_mode<synchronous>, transform_indices = @transform_4, window_bounds = array<i64: 32, 16>}, {pipeline_mode = #tpu.pipeline_mode<synchronous>, transform_indices = @transform_5, window_bounds = array<i64: 16, 4>}, {transform_indices = @transform_6, window_bounds = array<i64: 128, 12>}]} {
    %c0 = arith.constant 0 : index
    %c0_0 = arith.constant 0 : index
    %0 = vector.load %arg1[%c0, %c0_0] : memref<128x24xbf16, #tpu.memory_space<vmem>>, vector<128x24xbf16>
    %c0_1 = arith.constant 0 : index
    %c0_2 = arith.constant 0 : index
    %1 = vector.load %arg2[%c0_1, %c0_2] : memref<24x64xbf16, #tpu.memory_space<vmem>>, vector<24x64xbf16>
    %cst = arith.constant dense<0.000000e+00> : vector<128x64xf32>
    %2 = tpu.matmul %0, %1, %cst {dimension_numbers = #tpu.dot_dimension_numbers<[1], [0], [0], [1], [0, 0, 1, 1], [], []>} : vector<128x24xbf16>, vector<24x64xbf16>, vector<128x64xf32> -> vector<128x64xf32>
    %3 = vector.extract_strided_slice %2 {offsets = [0, 0], sizes = [128, 32], strides = [1, 1]} : vector<128x64xf32> to vector<128x32xf32>
    %cst_3 = arith.constant 0.000000e+00 : f32
    %4 = vector.broadcast %cst_3 : f32 to vector<128x32xf32>
    %5 = arith.maximumf %3, %4 : vector<128x32xf32>
    %6 = vector.extract_strided_slice %2 {offsets = [0, 32], sizes = [128, 32], strides = [1, 1]} : vector<128x64xf32> to vector<128x32xf32>
    %7 = arith.truncf %5 : vector<128x32xf32> to vector<128x32xbf16>
    %c0_4 = arith.constant 0 : index
    %c0_5 = arith.constant 0 : index
    %8 = vector.load %arg3[%c0_4, %c0_5] : memref<32x32xbf16, #tpu.memory_space<vmem>>, vector<32x32xbf16>
    %cst_6 = arith.constant dense<0.000000e+00> : vector<128x32xf32>
    %9 = tpu.matmul %7, %8, %cst_6 {dimension_numbers = #tpu.dot_dimension_numbers<[1], [0], [0], [1], [0, 0, 1, 1], [], []>} : vector<128x32xbf16>, vector<32x32xbf16>, vector<128x32xf32> -> vector<128x32xf32>
    %cst_7 = arith.constant 0.000000e+00 : f32
    %10 = vector.broadcast %cst_7 : f32 to vector<128x32xf32>
    %11 = arith.maximumf %9, %10 : vector<128x32xf32>
    %12 = arith.truncf %11 : vector<128x32xf32> to vector<128x32xbf16>
    %c0_8 = arith.constant 0 : index
    %c0_9 = arith.constant 0 : index
    %13 = vector.load %arg4[%c0_8, %c0_9] : memref<32x40xbf16, #tpu.memory_space<vmem>>, vector<32x40xbf16>
    %cst_10 = arith.constant dense<0.000000e+00> : vector<128x40xf32>
    %14 = tpu.matmul %12, %13, %cst_10 {dimension_numbers = #tpu.dot_dimension_numbers<[1], [0], [0], [1], [0, 0, 1, 1], [], []>} : vector<128x32xbf16>, vector<32x40xbf16>, vector<128x40xf32> -> vector<128x40xf32>
    %15 = vector.extract_strided_slice %14 {offsets = [0, 0], sizes = [128, 8], strides = [1, 1]} : vector<128x40xf32> to vector<128x8xf32>
    %16 = vector.extract_strided_slice %14 {offsets = [0, 8], sizes = [128, 32], strides = [1, 1]} : vector<128x40xf32> to vector<128x32xf32>
    %17 = arith.addf %16, %6 : vector<128x32xf32>
    %18 = arith.truncf %17 : vector<128x32xf32> to vector<128x32xbf16>
    %c0_11 = arith.constant 0 : index
    %c0_12 = arith.constant 0 : index
    %19 = vector.load %arg5[%c0_11, %c0_12] : memref<32x16xbf16, #tpu.memory_space<vmem>>, vector<32x16xbf16>
    %cst_13 = arith.constant dense<0.000000e+00> : vector<128x16xf32>
    %20 = tpu.matmul %18, %19, %cst_13 {dimension_numbers = #tpu.dot_dimension_numbers<[1], [0], [0], [1], [0, 0, 1, 1], [], []>} : vector<128x32xbf16>, vector<32x16xbf16>, vector<128x16xf32> -> vector<128x16xf32>
    %cst_14 = arith.constant 0.000000e+00 : f32
    %21 = vector.broadcast %cst_14 : f32 to vector<128x16xf32>
    %22 = arith.maximumf %20, %21 : vector<128x16xf32>
    %23 = arith.truncf %22 : vector<128x16xf32> to vector<128x16xbf16>
    %c0_15 = arith.constant 0 : index
    %c0_16 = arith.constant 0 : index
    %24 = vector.load %arg6[%c0_15, %c0_16] : memref<16x4xbf16, #tpu.memory_space<vmem>>, vector<16x4xbf16>
    %cst_17 = arith.constant dense<0.000000e+00> : vector<128x4xf32>
    %25 = tpu.matmul %23, %24, %cst_17 {dimension_numbers = #tpu.dot_dimension_numbers<[1], [0], [0], [1], [0, 0, 1, 1], [], []>} : vector<128x16xbf16>, vector<16x4xbf16>, vector<128x4xf32> -> vector<128x4xf32>
    %c0_18 = arith.constant 0 : index
    %c0_19 = arith.constant 0 : index
    %26 = vector.load %arg7[%c0_18, %c0_19] : memref<128x12xf32, #tpu.memory_space<vmem>>, vector<128x8xf32>
    tpu.vector_store %arg7[%c0_18, %c0_19], %15 {strides = array<i32>} : memref<128x12xf32, #tpu.memory_space<vmem>>, vector<128x8xf32>,
    %c0_20 = arith.constant 0 : index
    %c8 = arith.constant 8 : index
    %27 = vector.load %arg7[%c0_20, %c8] : memref<128x12xf32, #tpu.memory_space<vmem>>, vector<128x4xf32>
    tpu.vector_store %arg7[%c0_20, %c8], %25 {strides = array<i32>} : memref<128x12xf32, #tpu.memory_space<vmem>>, vector<128x4xf32>,
    return
  }
  func.func @transform_0(%arg0: i32) -> (i32, i32) {
    %c0_i32 = arith.constant 0 : i32
    %c0_i32_0 = arith.constant 0 : i32
    return %arg0, %c0_i32 : i32, i32
  }
  func.func @transform_1(%arg0: i32) -> (i32, i32) {
    %c0_i32 = arith.constant 0 : i32
    %c0_i32_0 = arith.constant 0 : i32
    %c0_i32_1 = arith.constant 0 : i32
    return %c0_i32, %c0_i32_0 : i32, i32
  }
  func.func @transform_2(%arg0: i32) -> (i32, i32) {
    %c0_i32 = arith.constant 0 : i32
    %c0_i32_0 = arith.constant 0 : i32
    %c0_i32_1 = arith.constant 0 : i32
    return %c0_i32, %c0_i32_0 : i32, i32
  }
  func.func @transform_3(%arg0: i32) -> (i32, i32) {
    %c0_i32 = arith.constant 0 : i32
    %c0_i32_0 = arith.constant 0 : i32
    %c0_i32_1 = arith.constant 0 : i32
    return %c0_i32, %c0_i32_0 : i32, i32
  }
  func.func @transform_4(%arg0: i32) -> (i32, i32) {
    %c0_i32 = arith.constant 0 : i32
    %c0_i32_0 = arith.constant 0 : i32
    %c0_i32_1 = arith.constant 0 : i32
    return %c0_i32, %c0_i32_0 : i32, i32
  }
  func.func @transform_5(%arg0: i32) -> (i32, i32) {
    %c0_i32 = arith.constant 0 : i32
    %c0_i32_0 = arith.constant 0 : i32
    %c0_i32_1 = arith.constant 0 : i32
    return %c0_i32, %c0_i32_0 : i32, i32
  }
  func.func @transform_6(%arg0: i32) -> (i32, i32) {
    %c0_i32 = arith.constant 0 : i32
    %c0_i32_0 = arith.constant 0 : i32
    return %arg0, %c0_i32 : i32, i32
  }
}

</mosaic_0001>

<llo_original>
// kernel: tpu_custom_call.1
$region0: #{tpu_custom_call.1}
  #allocation0 [shape = 'u32[]', space=smem, size = 0x4, offset = 0x4, fixed_abs, tag = 'smem constant byte address 0x4 - core index']
  #allocation1 [shape = 'u32[144,128]{1,0:T(1,128)}', space=vmem, size = 0x12000, scoped, tag = 'internal scratch']
  %s0 = inlined_call_operand.vmem [shape: bf16[128,24], index: 0, kind: input, shape index: {}]
  %s1 = inlined_call_operand.vmem [shape: bf16[24,64], index: 1, kind: input, shape index: {}]
  %s2 = inlined_call_operand.vmem [shape: bf16[32,32], index: 2, kind: input, shape index: {}]
  %s3 = inlined_call_operand.vmem [shape: bf16[32,40], index: 3, kind: input, shape index: {}]
  %s4 = inlined_call_operand.vmem [shape: bf16[32,16], index: 4, kind: input, shape index: {}]
  %s5 = inlined_call_operand.vmem [shape: bf16[16,4], index: 5, kind: input, shape index: {}]
  %s6 = inlined_call_operand.vmem [shape: f32[128,12], index: 6, kind: output, shape index: {}]
  %s7 = sld [smem:[#allocation0]]
  $region34: #{tpu_custom_call.1} parent=0
    _
  %s9 = ssub.s32 1, %s7
  %s10 = scalar_select 0, %s9, %s7
  // Predicated region
  $region2: #{tpu_custom_call.1} parent=0 // pred_check
    _
  $region3: #{tpu_custom_call.1} parent=0 // pred_check_branch
    %12 = sbr.rel (0) target = $region5
  $region4: #{tpu_custom_call.1} parent=0 // pred_region
    _
  $region5: #{tpu_custom_call.1} parent=0 // pred_fallthru
    _
  // Predicated region
  $region6: #{tpu_custom_call.1} parent=0 // pred_check
    _
  $region7: #{tpu_custom_call.1} parent=0 // pred_check_branch
    %14 = sbr.rel (0) target = $region9
  $region8: #{tpu_custom_call.1} parent=0 // pred_region
    _
  $region9: #{tpu_custom_call.1} parent=0 // pred_fallthru
    _
  // Predicated region
  $region10: #{tpu_custom_call.1} parent=0 // pred_check
    _
  $region11: #{tpu_custom_call.1} parent=0 // pred_check_branch
    %16 = sbr.rel (0) target = $region13
  $region12: #{tpu_custom_call.1} parent=0 // pred_region
    _
  $region13: #{tpu_custom_call.1} parent=0 // pred_fallthru
    _
  // Predicated region
  $region14: #{tpu_custom_call.1} parent=0 // pred_check
    _
  $region15: #{tpu_custom_call.1} parent=0 // pred_check_branch
    %18 = sbr.rel (0) target = $region17
  $region16: #{tpu_custom_call.1} parent=0 // pred_region
    _
  $region17: #{tpu_custom_call.1} parent=0 // pred_fallthru
    _
  // Predicated region
  $region18: #{tpu_custom_call.1} parent=0 // pred_check
    _
  $region19: #{tpu_custom_call.1} parent=0 // pred_check_branch
    %20 = sbr.rel (0) target = $region21
  $region20: #{tpu_custom_call.1} parent=0 // pred_region
    _
  $region21: #{tpu_custom_call.1} parent=0 // pred_fallthru
    _
  // Predicated region
  $region22: #{tpu_custom_call.1} parent=0 // pred_check
    _
  $region23: #{tpu_custom_call.1} parent=0 // pred_check_branch
    %22 = sbr.rel (0) target = $region25
  $region24: #{tpu_custom_call.1} parent=0 // pred_region
    _
  $region25: #{tpu_custom_call.1} parent=0 // pred_fallthru
    _
  %v24 = vld [vmem:[%s0] sm:$0xf]
  %v25 = vld [vmem:[%s0 + $0x4] sm:$0xf]
  %v26 = vld [vmem:[%s0 + $0x8] sm:$0xf]
  %v27 = vld [vmem:[%s0 + $0xc] sm:$0xf]
  %v28 = vld [vmem:[%s0 + $0x10] sm:$0xf]
  %v29 = vld [vmem:[%s0 + $0x14] sm:$0xf]
  %v30 = vld [vmem:[%s0 + $0x18] sm:$0xf]
  %v31 = vld [vmem:[%s0 + $0x1c] sm:$0xf]
  %v32 = vld [vmem:[%s0 + $0x20] sm:$0xf]
  %v33 = vld [vmem:[%s0 + $0x24] sm:$0xf]
  %v34 = vld [vmem:[%s0 + $0x28] sm:$0xf]
  %v35 = vld [vmem:[%s0 + $0x2c] sm:$0xf]
  %v36 = vld [vmem:[%s0 + $0x30] sm:$0xf]
  %v37 = vld [vmem:[%s0 + $0x34] sm:$0xf]
  %v38 = vld [vmem:[%s0 + $0x38] sm:$0xf]
  %v39 = vld [vmem:[%s0 + $0x3c] sm:$0xf]
  %v40 = vld [vmem:[%s1] sm:$0xf]
  %v41 = vld [vmem:[%s1 + $0x4] sm:$0xf]
  %v42 = vld [vmem:[%s1 + $0x8] sm:$0xf]
  %v59 = vunpack.c.l.b16 %v24
  %v60 = vunpack.c.l.b16 %v25
  %v61 = vunpack.c.l.b16 %v26
  %v62 = vunpack.c.l.b16 %v27
  %v63 = vunpack.c.l.b16 %v28
  %v64 = vunpack.c.l.b16 %v29
  %v65 = vunpack.c.l.b16 %v30
  %v66 = vunpack.c.l.b16 %v31
  %v67 = vunpack.c.l.b16 %v32
  %v68 = vunpack.c.l.b16 %v33
  %v69 = vunpack.c.l.b16 %v34
  %v70 = vunpack.c.l.b16 %v35
  %v71 = vunpack.c.l.b16 %v36
  %v72 = vunpack.c.l.b16 %v37
  %v73 = vunpack.c.l.b16 %v38
  %v74 = vunpack.c.l.b16 %v39
  %v75 = vpack.c.b16 %v60, %v59
  %v76 = vpack.c.b16 %v62, %v61
  %v77 = vpack.c.b16 %v64, %v63
  %v78 = vpack.c.b16 %v66, %v65
  %v79 = vpack.c.b16 %v68, %v67
  %v80 = vpack.c.b16 %v70, %v69
  %v81 = vpack.c.b16 %v72, %v71
  %v82 = vpack.c.b16 %v74, %v73
  %v86 = vunpack.c.l.b16 %v40
  %v87 = vunpack.c.l.b16 %v41
  %v88 = vunpack.c.l.b16 %v42
  %v89 = vpack.c.b16 %v87, %v86
  %v90 = vpack.c.b16 %v88, %v88
  %vm92 = vcmask 195584
  %v94 = vsel %vm92, %v75, 0
  %v97 = vsel %vm92, %v76, 0
  %v100 = vsel %vm92, %v77, 0
  %v103 = vsel %vm92, %v78, 0
  %v106 = vsel %vm92, %v79, 0
  %v109 = vsel %vm92, %v80, 0
  %v112 = vsel %vm92, %v81, 0
  %v115 = vsel %vm92, %v82, 0
  %vm117 = vcmask 1043456
  %v119 = vsel %vm117, %v90, 0
  %121 = vmatprep.subr.bf16.mxu0 0
  %122 = vmatpush1.bf16.msra.mxu0 %v89
  %123 = vmatprep.subr.bf16.mxu0 0
  %124 = vmatpush1.bf16.msra.mxu0 %v119
  %125 = vmatprep.subr.bf16.mxu0 0
  %126 = vmatpush1.bf16.msra.mxu0 0
  %127 = vmatprep.subr.bf16.mxu0 0
  %128 = vmatpush1.bf16.msra.mxu0 0
  %129 = vmatprep.subr.bf16.mxu0 0
  %130 = vmatpush1.bf16.msra.mxu0 0
  %131 = vmatprep.subr.bf16.mxu0 0
  %132 = vmatpush1.bf16.msra.mxu0 0
  %133 = vmatprep.subr.bf16.mxu0 0
  %134 = vmatpush1.bf16.msra.mxu0 0
  %135 = vmatprep.subr.bf16.mxu0 0
  %136 = vmatpush1.bf16.msra.mxu0 0
  %137 = vmatprep.subr.bf16.mxu0 0
  %138 = vmatpush1.bf16.msra.mxu0 0
  %139 = vmatprep.subr.bf16.mxu0 0
  %140 = vmatpush1.bf16.msra.mxu0 0
  %141 = vmatprep.subr.bf16.mxu0 0
  %142 = vmatpush1.bf16.msra.mxu0 0
  %143 = vmatprep.subr.bf16.mxu0 0
  %144 = vmatpush1.bf16.msra.mxu0 0
  %145 = vmatprep.subr.bf16.mxu0 0
  %146 = vmatpush1.bf16.msra.mxu0 0
  %147 = vmatprep.subr.bf16.mxu0 0
  %148 = vmatpush1.bf16.msra.mxu0 0
  %149 = vmatprep.subr.bf16.mxu0 0
  %150 = vmatpush1.bf16.msra.mxu0 0
  %151 = vmatprep.subr.bf16.mxu0 0
  %152 = vmatpush1.bf16.msra.mxu0 0
  %153 = vmatprep.mubr.bf16.mxu0 0
  %154 = vmatmul.mubr.bf16.gmra.mrb[0].mxu0 %v94
  %v155 = vpop.f32.mrb[0].mxu0
  %v156 = vadd.f32 0.0, %v155
  %v157 = vpop.f32.mrb[0].mxu0
  %v158 = vpop.f32.mrb[0].mxu0
  %v159 = vadd.f32 0.0, %v158
  %v160 = vpop.f32.mrb[0].mxu0
  %161 = vmatprep.mubr.bf16.mxu0 0
  %162 = vmatmul.mubr.bf16.gmra.mrb[0].mxu0 %v97
  %v163 = vpop.f32.mrb[0].mxu0
  %v164 = vadd.f32 0.0, %v163
  %v165 = vpop.f32.mrb[0].mxu0
  %v166 = vpop.f32.mrb[0].mxu0
  %v167 = vadd.f32 0.0, %v166
  %v168 = vpop.f32.mrb[0].mxu0
  %169 = vmatprep.mubr.bf16.mxu0 0
  %170 = vmatmul.mubr.bf16.gmra.mrb[0].mxu0 %v100
  %v171 = vpop.f32.mrb[0].mxu0
  %v172 = vadd.f32 0.0, %v171
  %v173 = vpop.f32.mrb[0].mxu0
  %v174 = vpop.f32.mrb[0].mxu0
  %v175 = vadd.f32 0.0, %v174
  %v176 = vpop.f32.mrb[0].mxu0
  %177 = vmatprep.mubr.bf16.mxu0 0
  %178 = vmatmul.mubr.bf16.gmra.mrb[0].mxu0 %v103
  %v179 = vpop.f32.mrb[0].mxu0
  %v180 = vadd.f32 0.0, %v179
  %v181 = vpop.f32.mrb[0].mxu0
  %v182 = vpop.f32.mrb[0].mxu0
  %v183 = vadd.f32 0.0, %v182
  %v184 = vpop.f32.mrb[0].mxu0
  %185 = vmatprep.mubr.bf16.mxu0 0
  %186 = vmatmul.mubr.bf16.gmra.mrb[0].mxu0 %v106
  %v187 = vpop.f32.mrb[0].mxu0
  %v188 = vadd.f32 0.0, %v187
  %v189 = vpop.f32.mrb[0].mxu0
  %v190 = vpop.f32.mrb[0].mxu0
  %v191 = vadd.f32 0.0, %v190
  %v192 = vpop.f32.mrb[0].mxu0
  %193 = vmatprep.mubr.bf16.mxu0 0
  %194 = vmatmul.mubr.bf16.gmra.mrb[0].mxu0 %v109
  %v195 = vpop.f32.mrb[0].mxu0
  %v196 = vadd.f32 0.0, %v195
  %v197 = vpop.f32.mrb[0].mxu0
  %v198 = vpop.f32.mrb[0].mxu0
  %v199 = vadd.f32 0.0, %v198
  %v200 = vpop.f32.mrb[0].mxu0
  %201 = vmatprep.mubr.bf16.mxu0 0
  %202 = vmatmul.mubr.bf16.gmra.mrb[0].mxu0 %v112
  %v203 = vpop.f32.mrb[0].mxu0
  %v204 = vadd.f32 0.0, %v203
  %v205 = vpop.f32.mrb[0].mxu0
  %v206 = vpop.f32.mrb[0].mxu0
  %v207 = vadd.f32 0.0, %v206
  %v208 = vpop.f32.mrb[0].mxu0
  %209 = vmatprep.mubr.bf16.mxu0 0
  %210 = vmatmul.mubr.bf16.gmra.mrb[0].mxu0 %v115
  %v211 = vpop.f32.mrb[0].mxu0
  %v212 = vadd.f32 0.0, %v211
  %v213 = vpop.f32.mrb[0].mxu0
  %v214 = vpop.f32.mrb[0].mxu0
  %v215 = vadd.f32 0.0, %v214
  %v216 = vpop.f32.mrb[0].mxu0
  %217 = vdwg.mxu0
  %v218 = vmax.f32 %v156, 0.0
  %v219 = vmax.f32 %v159, 0.0
  %v220 = vmax.f32 %v164, 0.0
  %v221 = vmax.f32 %v167, 0.0
  %v222 = vmax.f32 %v172, 0.0
  %v223 = vmax.f32 %v175, 0.0
  %v224 = vmax.f32 %v180, 0.0
  %v225 = vmax.f32 %v183, 0.0
  %v226 = vmax.f32 %v188, 0.0
  %v227 = vmax.f32 %v191, 0.0
  %v228 = vmax.f32 %v196, 0.0
  %v229 = vmax.f32 %v199, 0.0
  %v230 = vmax.f32 %v204, 0.0
  %v231 = vmax.f32 %v207, 0.0
  %v232 = vmax.f32 %v212, 0.0
  %v233 = vmax.f32 %v215, 0.0
  %v234 = vpack.c.bf16 %v219, %v218
  %v235 = vpack.c.bf16 %v221, %v220
  %v236 = vpack.c.bf16 %v223, %v222
  %v237 = vpack.c.bf16 %v225, %v224
  %v238 = vpack.c.bf16 %v227, %v226
  %v239 = vpack.c.bf16 %v229, %v228
  %v240 = vpack.c.bf16 %v231, %v230
  %v241 = vpack.c.bf16 %v233, %v232
  %v242 = vld [vmem:[%s2] sm:$0xf]
  %v243 = vld [vmem:[%s2 + $0x4] sm:$0xf]
  %v244 = vld [vmem:[%s2 + $0x8] sm:$0xf]
  %v245 = vld [vmem:[%s2 + $0xc] sm:$0xf]
  %v250 = vunpack.c.l.b16 %v242
  %v251 = vunpack.c.l.b16 %v243
  %v252 = vunpack.c.l.b16 %v244
  %v253 = vunpack.c.l.b16 %v245
  %v254 = vpack.c.b16 %v251, %v250
  %v255 = vpack.c.b16 %v253, %v252
  %vm258 = vcmask 261120
  %v260 = vsel %vm258, %v234, 0
  %v263 = vsel %vm258, %v235, 0
  %v266 = vsel %vm258, %v236, 0
  %v269 = vsel %vm258, %v237, 0
  %v272 = vsel %vm258, %v238, 0
  %v275 = vsel %vm258, %v239, 0
  %v278 = vsel %vm258, %v240, 0
  %v281 = vsel %vm258, %v241, 0
  %283 = vmatprep.subr.bf16.mxu0 0
  %284 = vmatpush1.bf16.msra.mxu0 %v254
  %285 = vmatprep.subr.bf16.mxu0 0
  %286 = vmatpush1.bf16.msra.mxu0 %v255
  %287 = vmatprep.subr.bf16.mxu0 0
  %288 = vmatpush1.bf16.msra.mxu0 0
  %289 = vmatprep.subr.bf16.mxu0 0
  %290 = vmatpush1.bf16.msra.mxu0 0
  %291 = vmatprep.subr.bf16.mxu0 0
  %292 = vmatpush1.bf16.msra.mxu0 0
  %293 = vmatprep.subr.bf16.mxu0 0
  %294 = vmatpush1.bf16.msra.mxu0 0
  %295 = vmatprep.subr.bf16.mxu0 0
  %296 = vmatpush1.bf16.msra.mxu0 0
  %297 = vmatprep.subr.bf16.mxu0 0
  %298 = vmatpush1.bf16.msra.mxu0 0
  %299 = vmatprep.subr.bf16.mxu0 0
  %300 = vmatpush1.bf16.msra.mxu0 0
  %301 = vmatprep.subr.bf16.mxu0 0
  %302 = vmatpush1.bf16.msra.mxu0 0
  %303 = vmatprep.subr.bf16.mxu0 0
  %304 = vmatpush1.bf16.msra.mxu0 0
  %305 = vmatprep.subr.bf16.mxu0 0
  %306 = vmatpush1.bf16.msra.mxu0 0
  %307 = vmatprep.subr.bf16.mxu0 0
  %308 = vmatpush1.bf16.msra.mxu0 0
  %309 = vmatprep.subr.bf16.mxu0 0
  %310 = vmatpush1.bf16.msra.mxu0 0
  %311 = vmatprep.subr.bf16.mxu0 0
  %312 = vmatpush1.bf16.msra.mxu0 0
  %313 = vmatprep.subr.bf16.mxu0 0
  %314 = vmatpush1.bf16.msra.mxu0 0
  %315 = vmatprep.mubr.bf16.mxu0 0
  %316 = vmatmul.mubr.bf16.gmra.mrb[0].mxu0 %v260
  %v317 = vpop.f32.mrb[0].mxu0
  %v318 = vadd.f32 0.0, %v317
  %v319 = vpop.f32.mrb[0].mxu0
  %v320 = vpop.f32.mrb[0].mxu0
  %v321 = vadd.f32 0.0, %v320
  %v322 = vpop.f32.mrb[0].mxu0
  %323 = vmatprep.mubr.bf16.mxu0 0
  %324 = vmatmul.mubr.bf16.gmra.mrb[0].mxu0 %v263
  %v325 = vpop.f32.mrb[0].mxu0
  %v326 = vadd.f32 0.0, %v325
  %v327 = vpop.f32.mrb[0].mxu0
  %v328 = vpop.f32.mrb[0].mxu0
  %v329 = vadd.f32 0.0, %v328
  %v330 = vpop.f32.mrb[0].mxu0
  %331 = vmatprep.mubr.bf16.mxu0 0
  %332 = vmatmul.mubr.bf16.gmra.mrb[0].mxu0 %v266
  %v333 = vpop.f32.mrb[0].mxu0
  %v334 = vadd.f32 0.0, %v333
  %v335 = vpop.f32.mrb[0].mxu0
  %v336 = vpop.f32.mrb[0].mxu0
  %v337 = vadd.f32 0.0, %v336
  %v338 = vpop.f32.mrb[0].mxu0
  %339 = vmatprep.mubr.bf16.mxu0 0
  %340 = vmatmul.mubr.bf16.gmra.mrb[0].mxu0 %v269
  %v341 = vpop.f32.mrb[0].mxu0
  %v342 = vadd.f32 0.0, %v341
  %v343 = vpop.f32.mrb[0].mxu0
  %v344 = vpop.f32.mrb[0].mxu0
  %v345 = vadd.f32 0.0, %v344
  %v346 = vpop.f32.mrb[0].mxu0
  %347 = vmatprep.mubr.bf16.mxu0 0
  %348 = vmatmul.mubr.bf16.gmra.mrb[0].mxu0 %v272
  %v349 = vpop.f32.mrb[0].mxu0
  %v350 = vadd.f32 0.0, %v349
  %v351 = vpop.f32.mrb[0].mxu0
  %v352 = vpop.f32.mrb[0].mxu0
  %v353 = vadd.f32 0.0, %v352
  %v354 = vpop.f32.mrb[0].mxu0
  %355 = vmatprep.mubr.bf16.mxu0 0
  %356 = vmatmul.mubr.bf16.gmra.mrb[0].mxu0 %v275
  %v357 = vpop.f32.mrb[0].mxu0
  %v358 = vadd.f32 0.0, %v357
  %v359 = vpop.f32.mrb[0].mxu0
  %v360 = vpop.f32.mrb[0].mxu0
  %v361 = vadd.f32 0.0, %v360
  %v362 = vpop.f32.mrb[0].mxu0
  %363 = vmatprep.mubr.bf16.mxu0 0
  %364 = vmatmul.mubr.bf16.gmra.mrb[0].mxu0 %v278
  %v365 = vpop.f32.mrb[0].mxu0
  %v366 = vadd.f32 0.0, %v365
  %v367 = vpop.f32.mrb[0].mxu0
  %v368 = vpop.f32.mrb[0].mxu0
  %v369 = vadd.f32 0.0, %v368
  %v370 = vpop.f32.mrb[0].mxu0
  %371 = vmatprep.mubr.bf16.mxu0 0
  %372 = vmatmul.mubr.bf16.gmra.mrb[0].mxu0 %v281
  %v373 = vpop.f32.mrb[0].mxu0
  %v374 = vadd.f32 0.0, %v373
  %v375 = vpop.f32.mrb[0].mxu0
  %v376 = vpop.f32.mrb[0].mxu0
  %v377 = vadd.f32 0.0, %v376
  %v378 = vpop.f32.mrb[0].mxu0
  %379 = vdwg.mxu0
  %v380 = vmax.f32 %v318, 0.0
  %v381 = vmax.f32 %v321, 0.0
  %v382 = vmax.f32 %v326, 0.0
  %v383 = vmax.f32 %v329, 0.0
  %v384 = vmax.f32 %v334, 0.0
  %v385 = vmax.f32 %v337, 0.0
  %v386 = vmax.f32 %v342, 0.0
  %v387 = vmax.f32 %v345, 0.0
  %v388 = vmax.f32 %v350, 0.0
  %v389 = vmax.f32 %v353, 0.0
  %v390 = vmax.f32 %v358, 0.0
  %v391 = vmax.f32 %v361, 0.0
  %v392 = vmax.f32 %v366, 0.0
  %v393 = vmax.f32 %v369, 0.0
  %v394 = vmax.f32 %v374, 0.0
  %v395 = vmax.f32 %v377, 0.0
  %v396 = vpack.c.bf16 %v381, %v380
  %v397 = vpack.c.bf16 %v383, %v382
  %v398 = vpack.c.bf16 %v385, %v384
  %v399 = vpack.c.bf16 %v387, %v386
  %v400 = vpack.c.bf16 %v389, %v388
  %v401 = vpack.c.bf16 %v391, %v390
  %v402 = vpack.c.bf16 %v393, %v392
  %v403 = vpack.c.bf16 %v395, %v394
  %v404 = vld [vmem:[%s3] sm:$0xf]
  %v405 = vld [vmem:[%s3 + $0x4] sm:$0xf]
  %v406 = vld [vmem:[%s3 + $0x8] sm:$0xf]
  %v407 = vld [vmem:[%s3 + $0xc] sm:$0xf]
  %v412 = vunpack.c.l.b16 %v404
  %v413 = vunpack.c.l.b16 %v405
  %v414 = vunpack.c.l.b16 %v406
  %v415 = vunpack.c.l.b16 %v407
  %v416 = vpack.c.b16 %v413, %v412
  %v417 = vpack.c.b16 %v415, %v414
  %v421 = vsel %vm258, %v396, 0
  %v424 = vsel %vm258, %v397, 0
  %v427 = vsel %vm258, %v398, 0
  %v430 = vsel %vm258, %v399, 0
  %v433 = vsel %vm258, %v400, 0
  %v436 = vsel %vm258, %v401, 0
  %v439 = vsel %vm258, %v402, 0
  %v442 = vsel %vm258, %v403, 0
  %444 = vmatprep.subr.bf16.mxu0 0
  %445 = vmatpush1.bf16.msra.mxu0 %v416
  %446 = vmatprep.subr.bf16.mxu0 0
  %447 = vmatpush1.bf16.msra.mxu0 %v417
  %448 = vmatprep.subr.bf16.mxu0 0
  %449 = vmatpush1.bf16.msra.mxu0 0
  %450 = vmatprep.subr.bf16.mxu0 0
  %451 = vmatpush1.bf16.msra.mxu0 0
  %452 = vmatprep.subr.bf16.mxu0 0
  %453 = vmatpush1.bf16.msra.mxu0 0
  %454 = vmatprep.subr.bf16.mxu0 0
  %455 = vmatpush1.bf16.msra.mxu0 0
  %456 = vmatprep.subr.bf16.mxu0 0
  %457 = vmatpush1.bf16.msra.mxu0 0
  %458 = vmatprep.subr.bf16.mxu0 0
  %459 = vmatpush1.bf16.msra.mxu0 0
  %460 = vmatprep.subr.bf16.mxu0 0
  %461 = vmatpush1.bf16.msra.mxu0 0
  %462 = vmatprep.subr.bf16.mxu0 0
  %463 = vmatpush1.bf16.msra.mxu0 0
  %464 = vmatprep.subr.bf16.mxu0 0
  %465 = vmatpush1.bf16.msra.mxu0 0
  %466 = vmatprep.subr.bf16.mxu0 0
  %467 = vmatpush1.bf16.msra.mxu0 0
  %468 = vmatprep.subr.bf16.mxu0 0
  %469 = vmatpush1.bf16.msra.mxu0 0
  %470 = vmatprep.subr.bf16.mxu0 0
  %471 = vmatpush1.bf16.msra.mxu0 0
  %472 = vmatprep.subr.bf16.mxu0 0
  %473 = vmatpush1.bf16.msra.mxu0 0
  %474 = vmatprep.subr.bf16.mxu0 0
  %475 = vmatpush1.bf16.msra.mxu0 0
  %476 = vmatprep.mubr.bf16.mxu0 0
  %477 = vmatmul.mubr.bf16.gmra.mrb[0].mxu0 %v421
  %v478 = vpop.f32.mrb[0].mxu0
  %v479 = vadd.f32 0.0, %v478
  %v480 = vpop.f32.mrb[0].mxu0
  %v481 = vpop.f32.mrb[0].mxu0
  %v482 = vadd.f32 0.0, %v481
  %v483 = vpop.f32.mrb[0].mxu0
  %484 = vmatprep.mubr.bf16.mxu0 0
  %485 = vmatmul.mubr.bf16.gmra.mrb[0].mxu0 %v424
  %v486 = vpop.f32.mrb[0].mxu0
  %v487 = vadd.f32 0.0, %v486
  %v488 = vpop.f32.mrb[0].mxu0
  %v489 = vpop.f32.mrb[0].mxu0
  %v490 = vadd.f32 0.0, %v489
  %v491 = vpop.f32.mrb[0].mxu0
  %492 = vmatprep.mubr.bf16.mxu0 0
  %493 = vmatmul.mubr.bf16.gmra.mrb[0].mxu0 %v427
  %v494 = vpop.f32.mrb[0].mxu0
  %v495 = vadd.f32 0.0, %v494
  %v496 = vpop.f32.mrb[0].mxu0
  %v497 = vpop.f32.mrb[0].mxu0
  %v498 = vadd.f32 0.0, %v497
  %v499 = vpop.f32.mrb[0].mxu0
  %500 = vmatprep.mubr.bf16.mxu0 0
  %501 = vmatmul.mubr.bf16.gmra.mrb[0].mxu0 %v430
  %v502 = vpop.f32.mrb[0].mxu0
  %v503 = vadd.f32 0.0, %v502
  %v504 = vpop.f32.mrb[0].mxu0
  %v505 = vpop.f32.mrb[0].mxu0
  %v506 = vadd.f32 0.0, %v505
  %v507 = vpop.f32.mrb[0].mxu0
  %508 = vmatprep.mubr.bf16.mxu0 0
  %509 = vmatmul.mubr.bf16.gmra.mrb[0].mxu0 %v433
  %v510 = vpop.f32.mrb[0].mxu0
  %v511 = vadd.f32 0.0, %v510
  %v512 = vpop.f32.mrb[0].mxu0
  %v513 = vpop.f32.mrb[0].mxu0
  %v514 = vadd.f32 0.0, %v513
  %v515 = vpop.f32.mrb[0].mxu0
  %516 = vmatprep.mubr.bf16.mxu0 0
  %517 = vmatmul.mubr.bf16.gmra.mrb[0].mxu0 %v436
  %v518 = vpop.f32.mrb[0].mxu0
  %v519 = vadd.f32 0.0, %v518
  %v520 = vpop.f32.mrb[0].mxu0
  %v521 = vpop.f32.mrb[0].mxu0
  %v522 = vadd.f32 0.0, %v521
  %v523 = vpop.f32.mrb[0].mxu0
  %524 = vmatprep.mubr.bf16.mxu0 0
  %525 = vmatmul.mubr.bf16.gmra.mrb[0].mxu0 %v439
  %v526 = vpop.f32.mrb[0].mxu0
  %v527 = vadd.f32 0.0, %v526
  %v528 = vpop.f32.mrb[0].mxu0
  %v529 = vpop.f32.mrb[0].mxu0
  %v530 = vadd.f32 0.0, %v529
  %v531 = vpop.f32.mrb[0].mxu0
  %532 = vmatprep.mubr.bf16.mxu0 0
  %533 = vmatmul.mubr.bf16.gmra.mrb[0].mxu0 %v442
  %v534 = vpop.f32.mrb[0].mxu0
  %v535 = vadd.f32 0.0, %v534
  %v536 = vpop.f32.mrb[0].mxu0
  %v537 = vpop.f32.mrb[0].mxu0
  %v538 = vadd.f32 0.0, %v537
  %v539 = vpop.f32.mrb[0].mxu0
  %540 = vdwg.mxu0
  %557 = vrot.lane.b32.xlu0 %v156, 104
  %v558 = vpop.permute.xlu0 %557
  %559 = vrot.lane.b32.xlu0 %v159, 104
  %v560 = vpop.permute.xlu0 %559
  %561 = vrot.lane.b32.xlu0 %v164, 104
  %v562 = vpop.permute.xlu0 %561
  %563 = vrot.lane.b32.xlu0 %v167, 104
  %v564 = vpop.permute.xlu0 %563
  %565 = vrot.lane.b32.xlu0 %v172, 104
  %v566 = vpop.permute.xlu0 %565
  %567 = vrot.lane.b32.xlu0 %v175, 104
  %v568 = vpop.permute.xlu0 %567
  %569 = vrot.lane.b32.xlu0 %v180, 104
  %v570 = vpop.permute.xlu0 %569
  %571 = vrot.lane.b32.xlu0 %v183, 104
  %v572 = vpop.permute.xlu0 %571
  %573 = vrot.lane.b32.xlu0 %v188, 104
  %v574 = vpop.permute.xlu0 %573
  %575 = vrot.lane.b32.xlu0 %v191, 104
  %v576 = vpop.permute.xlu0 %575
  %577 = vrot.lane.b32.xlu0 %v196, 104
  %v578 = vpop.permute.xlu0 %577
  %579 = vrot.lane.b32.xlu0 %v199, 104
  %v580 = vpop.permute.xlu0 %579
  %581 = vrot.lane.b32.xlu0 %v204, 104
  %v582 = vpop.permute.xlu0 %581
  %583 = vrot.lane.b32.xlu0 %v207, 104
  %v584 = vpop.permute.xlu0 %583
  %585 = vrot.lane.b32.xlu0 %v212, 104
  %v586 = vpop.permute.xlu0 %585
  %587 = vrot.lane.b32.xlu0 %v215, 104
  %v588 = vpop.permute.xlu0 %587
  %v605 = vadd.f32 %v479, %v558
  %v606 = vadd.f32 %v482, %v560
  %v607 = vadd.f32 %v487, %v562
  %v608 = vadd.f32 %v490, %v564
  %v609 = vadd.f32 %v495, %v566
  %v610 = vadd.f32 %v498, %v568
  %v611 = vadd.f32 %v503, %v570
  %v612 = vadd.f32 %v506, %v572
  %v613 = vadd.f32 %v511, %v574
  %v614 = vadd.f32 %v514, %v576
  %v615 = vadd.f32 %v519, %v578
  %v616 = vadd.f32 %v522, %v580
  %v617 = vadd.f32 %v527, %v582
  %v618 = vadd.f32 %v530, %v584
  %v619 = vadd.f32 %v535, %v586
  %v620 = vadd.f32 %v538, %v588
  %v621 = vpack.c.bf16 %v606, %v605
  %v622 = vpack.c.bf16 %v608, %v607
  %v623 = vpack.c.bf16 %v610, %v609
  %v624 = vpack.c.bf16 %v612, %v611
  %v625 = vpack.c.bf16 %v614, %v613
  %v626 = vpack.c.bf16 %v616, %v615
  %v627 = vpack.c.bf16 %v618, %v617
  %v628 = vpack.c.bf16 %v620, %v619
  %v629 = vld [vmem:[%s4] sm:$0xf]
  %v630 = vld [vmem:[%s4 + $0x4] sm:$0xf]
  %v631 = vld [vmem:[%s4 + $0x8] sm:$0xf]
  %v632 = vld [vmem:[%s4 + $0xc] sm:$0xf]
  %641 = vrot.lane.b32.xlu0 %v621, 120
  %v642 = vpop.permute.xlu0 %641
  %643 = vrot.lane.b32.xlu0 %v622, 120
  %v644 = vpop.permute.xlu0 %643
  %645 = vrot.lane.b32.xlu0 %v623, 120
  %v646 = vpop.permute.xlu0 %645
  %647 = vrot.lane.b32.xlu0 %v624, 120
  %v648 = vpop.permute.xlu0 %647
  %649 = vrot.lane.b32.xlu0 %v625, 120
  %v650 = vpop.permute.xlu0 %649
  %651 = vrot.lane.b32.xlu0 %v626, 120
  %v652 = vpop.permute.xlu0 %651
  %653 = vrot.lane.b32.xlu0 %v627, 120
  %v654 = vpop.permute.xlu0 %653
  %655 = vrot.lane.b32.xlu0 %v628, 120
  %v656 = vpop.permute.xlu0 %655
  %v661 = vunpack.c.l.b16 %v629
  %v662 = vunpack.c.l.b16 %v630
  %v663 = vunpack.c.l.b16 %v631
  %v664 = vunpack.c.l.b16 %v632
  %v665 = vpack.c.b16 %v662, %v661
  %v666 = vpack.c.b16 %v664, %v663
  %v670 = vsel %vm258, %v642, 0
  %v673 = vsel %vm258, %v644, 0
  %v676 = vsel %vm258, %v646, 0
  %v679 = vsel %vm258, %v648, 0
  %v682 = vsel %vm258, %v650, 0
  %v685 = vsel %vm258, %v652, 0
  %v688 = vsel %vm258, %v654, 0
  %v691 = vsel %vm258, %v656, 0
  %693 = vmatprep.subr.bf16.mxu0 0
  %694 = vmatpush1.bf16.msra.mxu0 %v665
  %695 = vmatprep.subr.bf16.mxu0 0
  %696 = vmatpush1.bf16.msra.mxu0 %v666
  %697 = vmatprep.subr.bf16.mxu0 0
  %698 = vmatpush1.bf16.msra.mxu0 0
  %699 = vmatprep.subr.bf16.mxu0 0
  %700 = vmatpush1.bf16.msra.mxu0 0
  %701 = vmatprep.subr.bf16.mxu0 0
  %702 = vmatpush1.bf16.msra.mxu0 0
  %703 = vmatprep.subr.bf16.mxu0 0
  %704 = vmatpush1.bf16.msra.mxu0 0
  %705 = vmatprep.subr.bf16.mxu0 0
  %706 = vmatpush1.bf16.msra.mxu0 0
  %707 = vmatprep.subr.bf16.mxu0 0
  %708 = vmatpush1.bf16.msra.mxu0 0
  %709 = vmatprep.subr.bf16.mxu0 0
  %710 = vmatpush1.bf16.msra.mxu0 0
  %711 = vmatprep.subr.bf16.mxu0 0
  %712 = vmatpush1.bf16.msra.mxu0 0
  %713 = vmatprep.subr.bf16.mxu0 0
  %714 = vmatpush1.bf16.msra.mxu0 0
  %715 = vmatprep.subr.bf16.mxu0 0
  %716 = vmatpush1.bf16.msra.mxu0 0
  %717 = vmatprep.subr.bf16.mxu0 0
  %718 = vmatpush1.bf16.msra.mxu0 0
  %719 = vmatprep.subr.bf16.mxu0 0
  %720 = vmatpush1.bf16.msra.mxu0 0
  %721 = vmatprep.subr.bf16.mxu0 0
  %722 = vmatpush1.bf16.msra.mxu0 0
  %723 = vmatprep.subr.bf16.mxu0 0
  %724 = vmatpush1.bf16.msra.mxu0 0
  %725 = vmatprep.mubr.bf16.mxu0 0
  %726 = vmatmul.mubr.bf16.gmra.mrb[0].mxu0 %v670
  %v727 = vpop.f32.mrb[0].mxu0
  %v728 = vadd.f32 0.0, %v727
  %v729 = vpop.f32.mrb[0].mxu0
  %v730 = vpop.f32.mrb[0].mxu0
  %v731 = vadd.f32 0.0, %v730
  %v732 = vpop.f32.mrb[0].mxu0
  %733 = vmatprep.mubr.bf16.mxu0 0
  %734 = vmatmul.mubr.bf16.gmra.mrb[0].mxu0 %v673
  %v735 = vpop.f32.mrb[0].mxu0
  %v736 = vadd.f32 0.0, %v735
  %v737 = vpop.f32.mrb[0].mxu0
  %v738 = vpop.f32.mrb[0].mxu0
  %v739 = vadd.f32 0.0, %v738
  %v740 = vpop.f32.mrb[0].mxu0
  %741 = vmatprep.mubr.bf16.mxu0 0
  %742 = vmatmul.mubr.bf16.gmra.mrb[0].mxu0 %v676
  %v743 = vpop.f32.mrb[0].mxu0
  %v744 = vadd.f32 0.0, %v743
  %v745 = vpop.f32.mrb[0].mxu0
  %v746 = vpop.f32.mrb[0].mxu0
  %v747 = vadd.f32 0.0, %v746
  %v748 = vpop.f32.mrb[0].mxu0
  %749 = vmatprep.mubr.bf16.mxu0 0
  %750 = vmatmul.mubr.bf16.gmra.mrb[0].mxu0 %v679
  %v751 = vpop.f32.mrb[0].mxu0
  %v752 = vadd.f32 0.0, %v751
  %v753 = vpop.f32.mrb[0].mxu0
  %v754 = vpop.f32.mrb[0].mxu0
  %v755 = vadd.f32 0.0, %v754
  %v756 = vpop.f32.mrb[0].mxu0
  %757 = vmatprep.mubr.bf16.mxu0 0
  %758 = vmatmul.mubr.bf16.gmra.mrb[0].mxu0 %v682
  %v759 = vpop.f32.mrb[0].mxu0
  %v760 = vadd.f32 0.0, %v759
  %v761 = vpop.f32.mrb[0].mxu0
  %v762 = vpop.f32.mrb[0].mxu0
  %v763 = vadd.f32 0.0, %v762
  %v764 = vpop.f32.mrb[0].mxu0
  %765 = vmatprep.mubr.bf16.mxu0 0
  %766 = vmatmul.mubr.bf16.gmra.mrb[0].mxu0 %v685
  %v767 = vpop.f32.mrb[0].mxu0
  %v768 = vadd.f32 0.0, %v767
  %v769 = vpop.f32.mrb[0].mxu0
  %v770 = vpop.f32.mrb[0].mxu0
  %v771 = vadd.f32 0.0, %v770
  %v772 = vpop.f32.mrb[0].mxu0
  %773 = vmatprep.mubr.bf16.mxu0 0
  %774 = vmatmul.mubr.bf16.gmra.mrb[0].mxu0 %v688
  %v775 = vpop.f32.mrb[0].mxu0
  %v776 = vadd.f32 0.0, %v775
  %v777 = vpop.f32.mrb[0].mxu0
  %v778 = vpop.f32.mrb[0].mxu0
  %v779 = vadd.f32 0.0, %v778
  %v780 = vpop.f32.mrb[0].mxu0
  %781 = vmatprep.mubr.bf16.mxu0 0
  %782 = vmatmul.mubr.bf16.gmra.mrb[0].mxu0 %v691
  %v783 = vpop.f32.mrb[0].mxu0
  %v784 = vadd.f32 0.0, %v783
  %v785 = vpop.f32.mrb[0].mxu0
  %v786 = vpop.f32.mrb[0].mxu0
  %v787 = vadd.f32 0.0, %v786
  %v788 = vpop.f32.mrb[0].mxu0
  %789 = vdwg.mxu0
  %v790 = vmax.f32 %v728, 0.0
  %v791 = vmax.f32 %v731, 0.0
  %v792 = vmax.f32 %v736, 0.0
  %v793 = vmax.f32 %v739, 0.0
  %v794 = vmax.f32 %v744, 0.0
  %v795 = vmax.f32 %v747, 0.0
  %v796 = vmax.f32 %v752, 0.0
  %v797 = vmax.f32 %v755, 0.0
  %v798 = vmax.f32 %v760, 0.0
  %v799 = vmax.f32 %v763, 0.0
  %v800 = vmax.f32 %v768, 0.0
  %v801 = vmax.f32 %v771, 0.0
  %v802 = vmax.f32 %v776, 0.0
  %v803 = vmax.f32 %v779, 0.0
  %v804 = vmax.f32 %v784, 0.0
  %v805 = vmax.f32 %v787, 0.0
  %v806 = vpack.c.bf16 %v791, %v790
  %v807 = vpack.c.bf16 %v793, %v792
  %v808 = vpack.c.bf16 %v795, %v794
  %v809 = vpack.c.bf16 %v797, %v796
  %v810 = vpack.c.bf16 %v799, %v798
  %v811 = vpack.c.bf16 %v801, %v800
  %v812 = vpack.c.bf16 %v803, %v802
  %v813 = vpack.c.bf16 %v805, %v804
  %v814 = vld [vmem:[%s5] sm:$0xf]
  %v815 = vld [vmem:[%s5 + $0x4] sm:$0xf]
  %v818 = vunpack.c.l.b16 %v814
  %v819 = vunpack.c.l.b16 %v815
  %v820 = vpack.c.b16 %v819, %v818
  %vm822 = vcmask 130048
  %v824 = vsel %vm822, %v806, 0
  %v827 = vsel %vm822, %v807, 0
  %v830 = vsel %vm822, %v808, 0
  %v833 = vsel %vm822, %v809, 0
  %v836 = vsel %vm822, %v810, 0
  %v839 = vsel %vm822, %v811, 0
  %v842 = vsel %vm822, %v812, 0
  %v845 = vsel %vm822, %v813, 0
  %847 = vmatprep.subr.bf16.mxu0 0
  %848 = vmatpush1.bf16.msra.mxu0 %v820
  %849 = vmatprep.subr.bf16.mxu0 0
  %850 = vmatpush1.bf16.msra.mxu0 0
  %851 = vmatprep.subr.bf16.mxu0 0
  %852 = vmatpush1.bf16.msra.mxu0 0
  %853 = vmatprep.subr.bf16.mxu0 0
  %854 = vmatpush1.bf16.msra.mxu0 0
  %855 = vmatprep.subr.bf16.mxu0 0
  %856 = vmatpush1.bf16.msra.mxu0 0
  %857 = vmatprep.subr.bf16.mxu0 0
  %858 = vmatpush1.bf16.msra.mxu0 0
  %859 = vmatprep.subr.bf16.mxu0 0
  %860 = vmatpush1.bf16.msra.mxu0 0
  %861 = vmatprep.subr.bf16.mxu0 0
  %862 = vmatpush1.bf16.msra.mxu0 0
  %863 = vmatprep.subr.bf16.mxu0 0
  %864 = vmatpush1.bf16.msra.mxu0 0
  %865 = vmatprep.subr.bf16.mxu0 0
  %866 = vmatpush1.bf16.msra.mxu0 0
  %867 = vmatprep.subr.bf16.mxu0 0
  %868 = vmatpush1.bf16.msra.mxu0 0
  %869 = vmatprep.subr.bf16.mxu0 0
  %870 = vmatpush1.bf16.msra.mxu0 0
  %871 = vmatprep.subr.bf16.mxu0 0
  %872 = vmatpush1.bf16.msra.mxu0 0
  %873 = vmatprep.subr.bf16.mxu0 0
  %874 = vmatpush1.bf16.msra.mxu0 0
  %875 = vmatprep.subr.bf16.mxu0 0
  %876 = vmatpush1.bf16.msra.mxu0 0
  %877 = vmatprep.subr.bf16.mxu0 0
  %878 = vmatpush1.bf16.msra.mxu0 0
  %879 = vmatprep.mubr.bf16.mxu0 0
  %880 = vmatmul.mubr.bf16.gmra.mrb[0].mxu0 %v824
  %v881 = vpop.f32.mrb[0].mxu0
  %v882 = vadd.f32 0.0, %v881
  %v883 = vpop.f32.mrb[0].mxu0
  %v884 = vpop.f32.mrb[0].mxu0
  %v885 = vadd.f32 0.0, %v884
  %v886 = vpop.f32.mrb[0].mxu0
  %887 = vmatprep.mubr.bf16.mxu0 0
  %888 = vmatmul.mubr.bf16.gmra.mrb[0].mxu0 %v827
  %v889 = vpop.f32.mrb[0].mxu0
  %v890 = vadd.f32 0.0, %v889
  %v891 = vpop.f32.mrb[0].mxu0
  %v892 = vpop.f32.mrb[0].mxu0
  %v893 = vadd.f32 0.0, %v892
  %v894 = vpop.f32.mrb[0].mxu0
  %895 = vmatprep.mubr.bf16.mxu0 0
  %896 = vmatmul.mubr.bf16.gmra.mrb[0].mxu0 %v830
  %v897 = vpop.f32.mrb[0].mxu0
  %v898 = vadd.f32 0.0, %v897
  %v899 = vpop.f32.mrb[0].mxu0
  %v900 = vpop.f32.mrb[0].mxu0
  %v901 = vadd.f32 0.0, %v900
  %v902 = vpop.f32.mrb[0].mxu0
  %903 = vmatprep.mubr.bf16.mxu0 0
  %904 = vmatmul.mubr.bf16.gmra.mrb[0].mxu0 %v833
  %v905 = vpop.f32.mrb[0].mxu0
  %v906 = vadd.f32 0.0, %v905
  %v907 = vpop.f32.mrb[0].mxu0
  %v908 = vpop.f32.mrb[0].mxu0
  %v909 = vadd.f32 0.0, %v908
  %v910 = vpop.f32.mrb[0].mxu0
  %911 = vmatprep.mubr.bf16.mxu0 0
  %912 = vmatmul.mubr.bf16.gmra.mrb[0].mxu0 %v836
  %v913 = vpop.f32.mrb[0].mxu0
  %v914 = vadd.f32 0.0, %v913
  %v915 = vpop.f32.mrb[0].mxu0
  %v916 = vpop.f32.mrb[0].mxu0
  %v917 = vadd.f32 0.0, %v916
  %v918 = vpop.f32.mrb[0].mxu0
  %919 = vmatprep.mubr.bf16.mxu0 0
  %920 = vmatmul.mubr.bf16.gmra.mrb[0].mxu0 %v839
  %v921 = vpop.f32.mrb[0].mxu0
  %v922 = vadd.f32 0.0, %v921
  %v923 = vpop.f32.mrb[0].mxu0
  %v924 = vpop.f32.mrb[0].mxu0
  %v925 = vadd.f32 0.0, %v924
  %v926 = vpop.f32.mrb[0].mxu0
  %927 = vmatprep.mubr.bf16.mxu0 0
  %928 = vmatmul.mubr.bf16.gmra.mrb[0].mxu0 %v842
  %v929 = vpop.f32.mrb[0].mxu0
  %v930 = vadd.f32 0.0, %v929
  %v931 = vpop.f32.mrb[0].mxu0
  %v932 = vpop.f32.mrb[0].mxu0
  %v933 = vadd.f32 0.0, %v932
  %v934 = vpop.f32.mrb[0].mxu0
  %935 = vmatprep.mubr.bf16.mxu0 0
  %936 = vmatmul.mubr.bf16.gmra.mrb[0].mxu0 %v845
  %v937 = vpop.f32.mrb[0].mxu0
  %v938 = vadd.f32 0.0, %v937
  %v939 = vpop.f32.mrb[0].mxu0
  %v940 = vpop.f32.mrb[0].mxu0
  %v941 = vadd.f32 0.0, %v940
  %v942 = vpop.f32.mrb[0].mxu0
  %943 = vdwg.mxu0
  %vm944 = vcmask 64512
  %945 = vst.msk [vmem:[%s6] sm:$0xff] %vm944, %v479
  %946 = vst.msk [vmem:[%s6 + $0x8] sm:$0xff] %vm944, %v482
  %947 = vst.msk [vmem:[%s6 + $0x10] sm:$0xff] %vm944, %v487
  %948 = vst.msk [vmem:[%s6 + $0x18] sm:$0xff] %vm944, %v490
  %949 = vst.msk [vmem:[%s6 + $0x20] sm:$0xff] %vm944, %v495
  %950 = vst.msk [vmem:[%s6 + $0x28] sm:$0xff] %vm944, %v498
  %951 = vst.msk [vmem:[%s6 + $0x30] sm:$0xff] %vm944, %v503
  %952 = vst.msk [vmem:[%s6 + $0x38] sm:$0xff] %vm944, %v506
  %953 = vst.msk [vmem:[%s6 + $0x40] sm:$0xff] %vm944, %v511
  %954 = vst.msk [vmem:[%s6 + $0x48] sm:$0xff] %vm944, %v514
  %955 = vst.msk [vmem:[%s6 + $0x50] sm:$0xff] %vm944, %v519
  %956 = vst.msk [vmem:[%s6 + $0x58] sm:$0xff] %vm944, %v522
  %957 = vst.msk [vmem:[%s6 + $0x60] sm:$0xff] %vm944, %v527
  %958 = vst.msk [vmem:[%s6 + $0x68] sm:$0xff] %vm944, %v530
  %959 = vst.msk [vmem:[%s6 + $0x70] sm:$0xff] %vm944, %v535
  %960 = vst.msk [vmem:[%s6 + $0x78] sm:$0xff] %vm944, %v538
  %977 = vrot.lane.b32.xlu0 %v882, 8
  %v978 = vpop.permute.xlu0 %977
  %979 = vrot.lane.b32.xlu0 %v885, 8
  %v980 = vpop.permute.xlu0 %979
  %981 = vrot.lane.b32.xlu0 %v890, 8
  %v982 = vpop.permute.xlu0 %981
  %983 = vrot.lane.b32.xlu0 %v893, 8
  %v984 = vpop.permute.xlu0 %983
  %985 = vrot.lane.b32.xlu0 %v898, 8
  %v986 = vpop.permute.xlu0 %985
  %987 = vrot.lane.b32.xlu0 %v901, 8
  %v988 = vpop.permute.xlu0 %987
  %989 = vrot.lane.b32.xlu0 %v906, 8
  %v990 = vpop.permute.xlu0 %989
  %991 = vrot.lane.b32.xlu0 %v909, 8
  %v992 = vpop.permute.xlu0 %991
  %993 = vrot.lane.b32.xlu0 %v914, 8
  %v994 = vpop.permute.xlu0 %993
  %995 = vrot.lane.b32.xlu0 %v917, 8
  %v996 = vpop.permute.xlu0 %995
  %997 = vrot.lane.b32.xlu0 %v922, 8
  %v998 = vpop.permute.xlu0 %997
  %999 = vrot.lane.b32.xlu0 %v925, 8
  %v1000 = vpop.permute.xlu0 %999
  %1001 = vrot.lane.b32.xlu0 %v930, 8
  %v1002 = vpop.permute.xlu0 %1001
  %1003 = vrot.lane.b32.xlu0 %v933, 8
  %v1004 = vpop.permute.xlu0 %1003
  %1005 = vrot.lane.b32.xlu0 %v938, 8
  %v1006 = vpop.permute.xlu0 %1005
  %1007 = vrot.lane.b32.xlu0 %v941, 8
  %v1008 = vpop.permute.xlu0 %1007
  %vm1025 = vcmask 97344
  %1026 = vst.msk [vmem:[%s6] sm:$0xff] %vm1025, %v978
  %1027 = vst.msk [vmem:[%s6 + $0x8] sm:$0xff] %vm1025, %v980
  %1028 = vst.msk [vmem:[%s6 + $0x10] sm:$0xff] %vm1025, %v982
  %1029 = vst.msk [vmem:[%s6 + $0x18] sm:$0xff] %vm1025, %v984
  %1030 = vst.msk [vmem:[%s6 + $0x20] sm:$0xff] %vm1025, %v986
  %1031 = vst.msk [vmem:[%s6 + $0x28] sm:$0xff] %vm1025, %v988
  %1032 = vst.msk [vmem:[%s6 + $0x30] sm:$0xff] %vm1025, %v990
  %1033 = vst.msk [vmem:[%s6 + $0x38] sm:$0xff] %vm1025, %v992
  %1034 = vst.msk [vmem:[%s6 + $0x40] sm:$0xff] %vm1025, %v994
  %1035 = vst.msk [vmem:[%s6 + $0x48] sm:$0xff] %vm1025, %v996
  %1036 = vst.msk [vmem:[%s6 + $0x50] sm:$0xff] %vm1025, %v998
  %1037 = vst.msk [vmem:[%s6 + $0x58] sm:$0xff] %vm1025, %v1000
  %1038 = vst.msk [vmem:[%s6 + $0x60] sm:$0xff] %vm1025, %v1002
  %1039 = vst.msk [vmem:[%s6 + $0x68] sm:$0xff] %vm1025, %v1004
  %1040 = vst.msk [vmem:[%s6 + $0x70] sm:$0xff] %vm1025, %v1006
  %1041 = vst.msk [vmem:[%s6 + $0x78] sm:$0xff] %vm1025, %v1008
  // Predicated region
  $region26: #{tpu_custom_call.1} parent=0 // pred_check
    _
  $region27: #{tpu_custom_call.1} parent=0 // pred_check_branch
    %1043 = sbr.rel (0) target = $region29
  $region28: #{tpu_custom_call.1} parent=0 // pred_region
    _
  $region29: #{tpu_custom_call.1} parent=0 // pred_fallthru
    _
  // Predicated region
  $region30: #{tpu_custom_call.1} parent=0 // pred_check
    _
  $region31: #{tpu_custom_call.1} parent=0 // pred_check_branch
    %1045 = sbr.rel (0) target = $region33
  $region32: #{tpu_custom_call.1} parent=0 // pred_region
    _
  $region33: #{tpu_custom_call.1} parent=0 // pred_fallthru
    _

</llo_original>
